<compile_context>
chip_gen: v6e
topology: v6e:2x2x1
jax: 0.10.0
libtpu: 0.0.40
codegen_flags: <defaults>
</compile_context>

<pallas_src>
import functools
import numpy as np
import jax
import jax.numpy as jnp
from jax import lax
from jax.experimental import pallas as pl
from jax.experimental.pallas import tpu as pltpu

K = 3   # kernel_size
S = 2   # stride
# padding = 0, ceil_mode = True


def _ceil_out(n: int) -> int:
    # PyTorch ceil_mode output size: ceil((n - K) / S) + 1 (padding = 0).
    return -(-(n - K) // S) + 1


def _round_up(a: int, b: int) -> int:
    return -(-a // b) * b


def _maxpool_kernel(x_ref, selw_ref, o_ref, *, h, w, oh, ow, wm):
    # x_ref:    (cb, h, w)    input planes (pipelined VMEM block)
    # selw_ref: (wm, ow)      0/1 column-selection matrix (resident constant)
    # o_ref:    (cb, oh, ow)

    # 1) H window-max fused with the stride-S row downsample: sublane-strided
    #    loads directly from the input block (no padded scratch, no copy).
    acc = x_ref[:, pl.ds(0, oh, stride=S), :]                  # (cb, oh, w)
    for kh in range(1, K):
        # number of output rows whose window offset kh is still in-bounds
        nrows = min(oh, (h - 1 - kh) // S + 1)
        if nrows <= 0:
            continue
        if nrows == oh:
            acc = jnp.maximum(acc, x_ref[:, pl.ds(kh, oh, stride=S), :])
        else:
            part = x_ref[:, pl.ds(kh, nrows, stride=S), :]     # (cb, nrows, w)
            acc = jnp.concatenate(
                [jnp.maximum(acc[:, :nrows, :], part), acc[:, nrows:, :]],
                axis=1)

    # 2) W window-max via contiguous lane shifts (VPU); the last output
    #    column's shorter (ceil-mode) window is handled statically.
    m = acc[:, :, 0:wm]                                        # (cb, oh, wm)
    for kw in range(1, K):
        ncols = min(wm, w - kw)
        if ncols <= 0:
            continue
        if ncols == wm:
            m = jnp.maximum(m, acc[:, :, kw:kw + wm])
        else:
            m = jnp.concatenate(
                [jnp.maximum(m[:, :, :ncols], acc[:, :, kw:kw + ncols]),
                 m[:, :, ncols:]], axis=2)

    # 3) Stride-S column downsample: a single 2D 0/1-selection matmul on the
    #    MXU (lane compaction).  Exact for finite inputs.
    # TODO(synk): inf/NaN inputs would need a non-matmul compaction path
    #             (0 * inf/NaN = NaN leaks across the row).
    cb = m.shape[0]
    out = jnp.dot(m.reshape(cb * oh, wm), selw_ref[...],
                  preferred_element_type=jnp.float32)          # (cb*oh, ow)
    o_ref[...] = out.reshape(cb, oh, ow).astype(o_ref.dtype)


def _vmem_limit_bytes() -> int:
    phys = 64 * 1024 * 1024                     # safe default (v7x per-TC VMEM)
    try:
        info = pltpu.get_tpu_info()
        phys = int(getattr(info, "vmem_capacity_bytes", phys))
    except Exception:
        pass
    # ~96 MiB on 128-MiB parts (v5e/v6e), ~48 MiB on 64-MiB parts (v7x).
    return max(16 * 1024 * 1024, min((phys * 3) // 4, 96 * 1024 * 1024))


def _choose_cb(nc, itemsize, h, w, oh, ow, wm, budget):
    # VMEM footprint of one plane (lane/sublane padded): double-buffered
    # input/output blocks plus headroom for live vector values.
    in_vmem = itemsize * _round_up(h, 8) * _round_up(w, 128)
    out_vmem = itemsize * _round_up(oh, 8) * _round_up(ow, 128)
    work_vmem = (itemsize * _round_up(oh, 8) * (_round_up(w, 128) + _round_up(wm, 128))
                 + 4 * _round_up(oh, 8) * _round_up(ow, 128))
    per_plane = 2 * in_vmem + 2 * out_vmem + 2 * work_vmem

    target_bytes = 4 * 1024 * 1024              # ~4 MiB of input per grid step
    by_bytes = max(1, target_bytes // max(itemsize * h * w, 1))
    by_vmem = max(1, budget // max(per_plane, 1))
    cb = int(min(nc, by_bytes, by_vmem))
    if nc >= 4:                                 # keep >= 4 grid steps (v7x 2-TC overlap)
        cb = min(cb, max(1, nc // 4))
    cb = max(cb, 1)
    # Prefer an exact divisor of nc (no ragged last block) if one exists within
    # 2x of the byte-target block size; otherwise accept a ragged last block.
    for d in range(cb, 0, -1):
        if nc % d == 0:
            if 2 * d >= cb:
                return d
            break
    return cb


def maxpool2d_ceil(x: jax.Array) -> jax.Array:
    """nn.MaxPool2d(kernel_size=3, stride=2, padding=0, ceil_mode=True), NCHW."""
    if not jnp.issubdtype(x.dtype, jnp.floating):
        # TODO(synk): integer dtypes would need a non-MXU column compaction.
        raise NotImplementedError("maxpool2d_ceil: floating dtypes only")

    n, c, h, w = x.shape
    oh, ow = _ceil_out(h), _ceil_out(w)
    wm = (ow - 1) * S + 1                       # columns needed after the W-max
    nc = n * c
    itemsize = jnp.dtype(x.dtype).itemsize

    # Hoisted 0/1 column-selection matrix: trace-time constant; constant
    # index_map keeps it resident in VMEM across grid steps.
    sel_w = np.zeros((wm, ow), dtype=x.dtype)
    sel_w[S * np.arange(ow), np.arange(ow)] = 1
    sel_w = jnp.asarray(sel_w)

    vmem_limit = _vmem_limit_bytes()
    cb = _choose_cb(nc, itemsize, h, w, oh, ow, wm, vmem_limit - 4 * 1024 * 1024)
    # TODO(synk): planes too large for VMEM even at cb=1 (huge H*W on v7x) would
    #             need an H-tiled grid axis with a (K-S)=1-row halo.

    x3 = x.reshape(nc, h, w)                    # metadata-only reshape
    kernel = functools.partial(_maxpool_kernel, h=h, w=w, oh=oh, ow=ow, wm=wm)
    cost = pl.CostEstimate(
        flops=2 * nc * oh * wm * ow + (K * K - 1) * nc * oh * ow,
        transcendentals=0,
        bytes_accessed=nc * h * w * itemsize + nc * oh * ow * itemsize
                       + wm * ow * itemsize)

    out = pl.pallas_call(
        kernel,
        out_shape=jax.ShapeDtypeStruct((nc, oh, ow), x.dtype),
        grid=(pl.cdiv(nc, cb),),
        in_specs=[
            pl.BlockSpec((cb, h, w), lambda i: (i, 0, 0)),
            pl.BlockSpec((wm, ow), lambda i: (0, 0)),
        ],
        out_specs=pl.BlockSpec((cb, oh, ow), lambda i: (i, 0, 0)),
        compiler_params=pltpu.CompilerParams(
            dimension_semantics=("parallel",),
            vmem_limit_bytes=vmem_limit,
        ),
        cost_estimate=cost,
    )(x3, sel_w)
    return out.reshape(n, c, oh, ow)


def _reference_maxpool(x: np.ndarray) -> np.ndarray:
    n, c, h, w = x.shape
    oh, ow = _ceil_out(h), _ceil_out(w)
    out = np.empty((n, c, oh, ow), dtype=x.dtype)
    for i in range(oh):
        for j in range(ow):
            h0, w0 = i * S, j * S
            out[:, :, i, j] = x[:, :, h0:min(h0 + K, h),
                                w0:min(w0 + K, w)].max(axis=(2, 3))
    return out


if __name__ == "__main__":
    key = jax.random.PRNGKey(0)
    x = jax.random.normal(key, (2, 4, 16, 16), dtype=jnp.float32)

    y = jax.block_until_ready(maxpool2d_ceil(x))

    y_ref = _reference_maxpool(np.asarray(x))
    assert y.shape == y_ref.shape, (y.shape, y_ref.shape)
    np.testing.assert_allclose(np.asarray(y), y_ref, rtol=0, atol=0)
    print("KERNEL_OK")
</pallas_src>

<mosaic_0001>
module attributes {stable_mosaic.version = 11 : i64} {
  func.func @_maxpool_kernel(%arg0: i32, %arg1: memref<2x16x16xf32, #tpu.memory_space<vmem>>, %arg2: memref<15x8xf32, #tpu.memory_space<vmem>>, %arg3: memref<2x8x8xf32, #tpu.memory_space<vmem>>) attributes {dimension_semantics = [#tpu.dimension_semantics<parallel>], iteration_bounds = array<i64: 4>, scalar_prefetch = 0 : i64, scratch_operands = 0 : i64, tpu.core_type = #tpu.core_type<tc>, window_params = [{transform_indices = @transform_0, window_bounds = array<i64: 2, 16, 16>}, {pipeline_mode = #tpu.pipeline_mode<synchronous>, transform_indices = @transform_1, window_bounds = array<i64: 15, 8>}, {transform_indices = @transform_2, window_bounds = array<i64: 2, 8, 8>}]} {
    %c0 = arith.constant 0 : index
    %c0_0 = arith.constant 0 : index
    %c0_1 = arith.constant 0 : index
    %0 = tpu.strided_load %arg1[%c0, %c0_0, %c0_1] {strides = array<i32: 1, 2, 1>} : memref<2x16x16xf32, #tpu.memory_space<vmem>>, vector<2x8x16xf32>
    %c0_2 = arith.constant 0 : index
    %c1 = arith.constant 1 : index
    %c0_3 = arith.constant 0 : index
    %1 = tpu.strided_load %arg1[%c0_2, %c1, %c0_3] {strides = array<i32: 1, 2, 1>} : memref<2x16x16xf32, #tpu.memory_space<vmem>>, vector<2x8x16xf32>
    %2 = arith.maximumf %0, %1 : vector<2x8x16xf32>
    %c0_4 = arith.constant 0 : index
    %c2 = arith.constant 2 : index
    %c0_5 = arith.constant 0 : index
    %3 = tpu.strided_load %arg1[%c0_4, %c2, %c0_5] {strides = array<i32: 1, 2, 1>} : memref<2x16x16xf32, #tpu.memory_space<vmem>>, vector<2x7x16xf32>
    %4 = vector.extract_strided_slice %2 {offsets = [0, 0, 0], sizes = [2, 7, 16], strides = [1, 1, 1]} : vector<2x8x16xf32> to vector<2x7x16xf32>
    %5 = arith.maximumf %4, %3 : vector<2x7x16xf32>
    %6 = vector.extract_strided_slice %2 {offsets = [0, 7, 0], sizes = [2, 1, 16], strides = [1, 1, 1]} : vector<2x8x16xf32> to vector<2x1x16xf32>
    %7 = tpu.concatenate %5, %6 in 1 : vector<2x7x16xf32>, vector<2x1x16xf32> -> vector<2x8x16xf32>
    %8 = vector.extract_strided_slice %7 {offsets = [0, 0, 0], sizes = [2, 8, 15], strides = [1, 1, 1]} : vector<2x8x16xf32> to vector<2x8x15xf32>
    %9 = vector.extract_strided_slice %7 {offsets = [0, 0, 1], sizes = [2, 8, 15], strides = [1, 1, 1]} : vector<2x8x16xf32> to vector<2x8x15xf32>
    %10 = arith.maximumf %8, %9 : vector<2x8x15xf32>
    %11 = vector.extract_strided_slice %10 {offsets = [0, 0, 0], sizes = [2, 8, 14], strides = [1, 1, 1]} : vector<2x8x15xf32> to vector<2x8x14xf32>
    %12 = vector.extract_strided_slice %7 {offsets = [0, 0, 2], sizes = [2, 8, 14], strides = [1, 1, 1]} : vector<2x8x16xf32> to vector<2x8x14xf32>
    %13 = arith.maximumf %11, %12 : vector<2x8x14xf32>
    %14 = vector.extract_strided_slice %10 {offsets = [0, 0, 14], sizes = [2, 8, 1], strides = [1, 1, 1]} : vector<2x8x15xf32> to vector<2x8x1xf32>
    %15 = tpu.concatenate %13, %14 in 2 : vector<2x8x14xf32>, vector<2x8x1xf32> -> vector<2x8x15xf32>
    %16 = vector.shape_cast %15 : vector<2x8x15xf32> to vector<16x15xf32>
    %c0_6 = arith.constant 0 : index
    %c0_7 = arith.constant 0 : index
    %17 = vector.load %arg2[%c0_6, %c0_7] : memref<15x8xf32, #tpu.memory_space<vmem>>, vector<15x8xf32>
    %cst = arith.constant dense<0.000000e+00> : vector<16x8xf32>
    %18 = tpu.matmul %16, %17, %cst {dimension_numbers = #tpu.dot_dimension_numbers<[1], [0], [0], [1], [0, 0, 1, 1], [], []>} : vector<16x15xf32>, vector<15x8xf32>, vector<16x8xf32> -> vector<16x8xf32>
    %19 = vector.shape_cast %18 : vector<16x8xf32> to vector<2x8x8xf32>
    %c0_8 = arith.constant 0 : index
    %c0_9 = arith.constant 0 : index
    %c0_10 = arith.constant 0 : index
    %20 = vector.load %arg3[%c0_8, %c0_9, %c0_10] : memref<2x8x8xf32, #tpu.memory_space<vmem>>, vector<2x8x8xf32>
    tpu.vector_store %arg3[%c0_8, %c0_9, %c0_10], %19 {strides = array<i32>} : memref<2x8x8xf32, #tpu.memory_space<vmem>>, vector<2x8x8xf32>,
    return
  }
  func.func @transform_0(%arg0: i32) -> (i32, i32, i32) {
    %c0_i32 = arith.constant 0 : i32
    %c0_i32_0 = arith.constant 0 : i32
    %c0_i32_1 = arith.constant 0 : i32
    return %arg0, %c0_i32, %c0_i32_0 : i32, i32, i32
  }
  func.func @transform_1(%arg0: i32) -> (i32, i32) {
    %c0_i32 = arith.constant 0 : i32
    %c0_i32_0 = arith.constant 0 : i32
    %c0_i32_1 = arith.constant 0 : i32
    return %c0_i32, %c0_i32_0 : i32, i32
  }
  func.func @transform_2(%arg0: i32) -> (i32, i32, i32) {
    %c0_i32 = arith.constant 0 : i32
    %c0_i32_0 = arith.constant 0 : i32
    %c0_i32_1 = arith.constant 0 : i32
    return %arg0, %c0_i32, %c0_i32_0 : i32, i32, i32
  }
}

</mosaic_0001>

<llo_original>
// kernel: tpu_custom_call.1
$region0: #{tpu_custom_call.1}
  #allocation0 [shape = 'u32[]', space=smem, size = 0x4, offset = 0x4, fixed_abs, tag = 'smem constant byte address 0x4 - core index']
  #allocation1 [shape = 'u32[144,128]{1,0:T(1,128)}', space=vmem, size = 0x12000, scoped, tag = 'internal scratch']
  %s0 = inlined_call_operand.hbm [shape: f32[8,16,16], index: 0, kind: input, shape index: {}]
  %s1 = inlined_call_operand.vmem [shape: f32[15,8], index: 1, kind: input, shape index: {}]
  %s2 = inlined_call_operand.hbm [shape: f32[8,8,8], index: 2, kind: output, shape index: {}]
  %s3 = sld [smem:[#allocation0]]
  $region45: #{tpu_custom_call.1} parent=0
    _
  %s5 = ssub.s32 1, %s3
  %s6 = scalar_select 0, %s5, %s3
  $region1: #{tpu_custom_call.1} parent=0
    #allocation2 [shape = 'u8[32768]{0}', space=vmem, size = 0x8000, scoped, tag = 'input window, operand 0']
    #allocation3 [shape = 's32[2]{0}', space=sflag, size = 0x8, scoped, tag = 'scoped memory for tpu_custom_call.1']
    #allocation4 [shape = 's32[2]{0}', space=sflag, size = 0x8, scoped, tag = 'scoped memory for tpu_custom_call.1']
    #allocation5 [shape = 'u8[16384]{0}', space=vmem, size = 0x4000, scoped, tag = 'output window, operand 0']
    %7 = vsyncpa [#allocation3], 0
    %s8 = scalar_lea.sflag [#allocation3], 1
    %9 = vsyncpa %s8, 0
    %10 = vsyncpa [#allocation4], 0
    %s11 = scalar_lea.sflag [#allocation4], 1
    %12 = vsyncpa %s11, 0
    loop: start=0, step=1, limit=6
    $region2: #{tpu_custom_call.1} parent=1 // loop_pre_header
      _
    $region3: #{tpu_custom_call.1} parent=1 // loop_header
      %s14 = sphi 0, %s18
      %p15 = scmp.ge.s32.totalorder %s14, 6
      %s24 = sphi 0, %s26
      %s27 = sphi 0, %s24
      %s28 = sphi 0, %s27
      %s44 = sphi 0, %s28
      %s48 = sphi 0, %s48
      %s50 = sphi 0, %s48
      %s51 = sphi 0, %s50
      %s65 = sphi 0, %s51
      %s71 = sphi 0, %s73
      %s74 = sphi 0, %s71
      %s75 = sphi 0, %s74
      %s91 = sphi 0, %s75
    $region4: #{tpu_custom_call.1} parent=1 // loop_header_branch
      %17 = sbr.rel (%p15) target = $region8
    $region5: #{tpu_custom_call.1} parent=1 // loop_body
      %s19 = ssub.s32 %s14, 1
      %s20 = ssub.s32 %s14, 2
      %s21 = sadd.s32 %s14, 1
      %s22 = ssub.s32 %s14, %s21
      %p23 = scmp.eq.s32.totalorder %s22, 0
      %s25 = sadd.s32 %s24, 1
      %s26 = scalar_select %p23, %s24, %s25
      %p29 = pneg %p23
      %p30 = scmp.eq.s32.totalorder %s14, 3
      %p31 = por %p29, %p30
      %p32 = scmp.ne.s32.totalorder %s24, %s27
      %p33 = scmp.eq.s32.totalorder %s14, 0
      %p34 = por %p32, %p33
      %p35 = scmp.ne.s32.totalorder %s24, %s27
      %p36 = scmp.eq.s32.totalorder %s19, 3
      %p37 = por %p35, %p36
      %p38 = scmp.ne.s32.totalorder %s27, %s28
      %p39 = scmp.eq.s32.totalorder %s19, 0
      %p40 = por %p38, %p39
      %p41 = scmp.ne.s32.totalorder %s27, %s28
      %p42 = scmp.eq.s32.totalorder %s20, 3
      %p43 = por %p41, %p42
      %p45 = scmp.ne.s32.totalorder %s28, %s44
      %p46 = scmp.eq.s32.totalorder %s20, 0
      %p47 = por %p45, %p46
      %s49 = sadd.s32 %s48, 1
      %p52 = scmp.eq.s32.totalorder %s14, 3
      %p53 = scmp.ne.s32.totalorder %s48, %s50
      %p54 = scmp.eq.s32.totalorder %s14, 0
      %p55 = por %p53, %p54
      %p56 = scmp.ne.s32.totalorder %s48, %s50
      %p57 = scmp.eq.s32.totalorder %s19, 3
      %p58 = por %p56, %p57
      %p59 = scmp.ne.s32.totalorder %s50, %s51
      %p60 = scmp.eq.s32.totalorder %s19, 0
      %p61 = por %p59, %p60
      %p62 = scmp.ne.s32.totalorder %s50, %s51
      %p63 = scmp.eq.s32.totalorder %s20, 3
      %p64 = por %p62, %p63
      %p66 = scmp.ne.s32.totalorder %s51, %s65
      %p67 = scmp.eq.s32.totalorder %s20, 0
      %p68 = por %p66, %p67
      %s69 = ssub.s32 %s14, %s21
      %p70 = scmp.eq.s32.totalorder %s69, 0
      %s72 = sadd.s32 %s71, 1
      %s73 = scalar_select %p70, %s71, %s72
      %p76 = pneg %p70
      %p77 = scmp.eq.s32.totalorder %s14, 3
      %p78 = por %p76, %p77
      %p79 = scmp.ne.s32.totalorder %s71, %s74
      %p80 = scmp.eq.s32.totalorder %s14, 0
      %p81 = por %p79, %p80
      %p82 = scmp.ne.s32.totalorder %s71, %s74
      %p83 = scmp.eq.s32.totalorder %s19, 3
      %p84 = por %p82, %p83
      %p85 = scmp.ne.s32.totalorder %s74, %s75
      %p86 = scmp.eq.s32.totalorder %s19, 0
      %p87 = por %p85, %p86
      %p88 = scmp.ne.s32.totalorder %s74, %s75
      %p89 = scmp.eq.s32.totalorder %s20, 3
      %p90 = por %p88, %p89
      %p92 = scmp.ne.s32.totalorder %s75, %s91
      %p93 = scmp.eq.s32.totalorder %s20, 0
      %p94 = por %p92, %p93
      %p95 = scmp.le.s32.totalorder 1, %s14
      %p96 = scmp.lt.s32.totalorder %s14, 5
      %p97 = pnand %p95, %p96
      %p98 = pneg %p97
      // Predicated region
      $region9: #{tpu_custom_call.1} parent=5 // pred_check
        _
      $region10: #{tpu_custom_call.1} parent=5 // pred_check_branch
        %100 = sbr.rel (%p97) target = $region12
      $region11: #{tpu_custom_call.1} parent=5 // pred_region
        %s101 = ssub.s32 %s14, 1
        // Predicated region
        $region13: #{tpu_custom_call.1} parent=11 // pred_check
          %p102 = pneg %p61
        $region14: #{tpu_custom_call.1} parent=11 // pred_check_branch
          %104 = sbr.rel (%p102) target = $region16
        $region15: #{tpu_custom_call.1} parent=11 // pred_region
          _
        $region16: #{tpu_custom_call.1} parent=11 // pred_fallthru
          _
      $region12: #{tpu_custom_call.1} parent=5 // pred_fallthru
        _
      %p105 = scmp.lt.s32.totalorder %s14, 4
      // Predicated region
      $region17: #{tpu_custom_call.1} parent=5 // pred_check
        %p106 = pneg %p105
      $region18: #{tpu_custom_call.1} parent=5 // pred_check_branch
        %108 = sbr.rel (%p106) target = $region20
      $region19: #{tpu_custom_call.1} parent=5 // pred_region
        // Predicated region
        $region21: #{tpu_custom_call.1} parent=19 // pred_check
          %p109 = pneg %p34
        $region22: #{tpu_custom_call.1} parent=19 // pred_check_branch
          %111 = sbr.rel (%p109) target = $region24
        $region23: #{tpu_custom_call.1} parent=19 // pred_region
          %s112 = sand.u32 %s24, 1
          %s113 = scalar_lea.sflag [#allocation3], %s112
          %s114 = sand.u32 %s24, 1
          %s115 = smul.addr %s114, 32
          %s116 = scalar_lea.vmem [#allocation2], %s115
          %s117 = smul.u32 2, %s14
          %s119 = ssub.s32 512, 512
          %120 = vsyncadd %s113, %s119
          %s121 = smul.addr %s117, 2
          %s122 = smul.addr %s121, 128
          %s123 = scalar_lea.hbm %s0, %s122
          %s124 = sshll.u32 %s116, 4
          %s125 = int_to_ptr.vmem [resolvable:$true] %s124
          %130 = dma.hbm_to_vmem [thread:$0]  %s123, 512, %s125, %s113, 128, 128, 8
        $region24: #{tpu_custom_call.1} parent=19 // pred_fallthru
          _
      $region20: #{tpu_custom_call.1} parent=5 // pred_fallthru
        _
      %p131 = scmp.le.s32.totalorder 1, %s14
      %p132 = scmp.lt.s32.totalorder %s14, 5
      %p133 = pnand %p131, %p132
      %p134 = pneg %p133
      // Predicated region
      $region25: #{tpu_custom_call.1} parent=5 // pred_check
        _
      $region26: #{tpu_custom_call.1} parent=5 // pred_check_branch
        %136 = sbr.rel (%p133) target = $region28
      $region27: #{tpu_custom_call.1} parent=5 // pred_region
        %s137 = ssub.s32 %s14, 1
        %s138 = sand.u32 %s27, 1
        %s139 = scalar_lea.sflag [#allocation3], %s138
        %s140 = sand.u32 %s27, 1
        %s141 = smul.addr %s140, 32
        %s142 = scalar_lea.vmem [#allocation2], %s141
        // Predicated region
        $region29: #{tpu_custom_call.1} parent=27 // pred_check
          %p143 = pneg %p40
        $region30: #{tpu_custom_call.1} parent=27 // pred_check_branch
          %145 = sbr.rel (%p143) target = $region32
        $region31: #{tpu_custom_call.1} parent=27 // pred_region
          %146 = dma.done %s139, 512
        $region32: #{tpu_custom_call.1} parent=27 // pred_fallthru
          _
        %s147 = sand.u32 %s27, 1
        %s148 = scalar_lea.sflag [#allocation3], %s147
        %s149 = sand.u32 %s27, 1
        %s150 = smul.addr %s149, 32
        %s151 = scalar_lea.vmem [#allocation2], %s150
        %p152 = pneg %p40
        %p153 = pneg %p37
        %p154 = pneg %p61
        %p155 = pneg %p58
        %p156 = pneg %p87
        %p157 = pneg %p84
        %s158 = sand.u32 %s74, 1
        %s159 = scalar_lea.sflag [#allocation4], %s158
        %s160 = sand.u32 %s74, 1
        %s161 = smul.addr %s160, 16
        %s162 = scalar_lea.vmem [#allocation5], %s161
        %s163 = smul.u32 2, %s19
        %s164 = smul.u32 2, %s19
        %v165 = vld [vmem:[%s142] ss:$2 sm:$0xff]
        %s166 = scalar_lea.vmem %s142, 16 [#allocation2]
        %v167 = vld [vmem:[%s166] ss:$2 sm:$0xff]
        %s168 = scalar_lea.vmem %s142, 1 [#allocation2]
        %v169 = vld [vmem:[%s168] ss:$2 sm:$0xff]
        %s170 = scalar_lea.vmem %s142, 17 [#allocation2]
        %v171 = vld [vmem:[%s170] ss:$2 sm:$0xff]
        %v172 = vmax.f32 %v165, %v169
        %v173 = vmax.f32 %v167, %v171
        %s174 = scalar_lea.vmem %s142, 2 [#allocation2]
        %v175 = vld [vmem:[%s174] ss:$2 sm:$0x7f]
        %s176 = scalar_lea.vmem %s142, 18 [#allocation2]
        %v177 = vld [vmem:[%s176] ss:$2 sm:$0x7f]
        %v178 = vmax.f32 %v172, %v175
        %v179 = vmax.f32 %v173, %v177
        %vm180 = vcmask 1046528
        %v181 = vsel %vm180, %v178, %v172
        %v182 = vsel %vm180, %v179, %v173
        %185 = vrot.lane.b32.xlu0 %v181, 127
        %v186 = vpop.permute.xlu0 %185
        %187 = vrot.lane.b32.xlu0 %v182, 127
        %v188 = vpop.permute.xlu0 %187
        %v191 = vmax.f32 %v181, %v186
        %v192 = vmax.f32 %v182, %v188
        %193 = vrot.lane.b32.xlu0 %v181, 126
        %v194 = vpop.permute.xlu0 %193
        %195 = vrot.lane.b32.xlu0 %v182, 126
        %v196 = vpop.permute.xlu0 %195
        %v199 = vmax.f32 %v191, %v194
        %v200 = vmax.f32 %v192, %v196
        %vm201 = vcmask 113664
        %v202 = vsel %vm201, %v199, %v191
        %v203 = vsel %vm201, %v200, %v192
        %v204 = vld [vmem:[%s1] sm:$0xff]
        %v205 = vld [vmem:[%s1 + $0x8] sm:$0x7f]
        %vm206 = vcmask 121856
        %v208 = vsel %vm206, %v202, 0
        %v211 = vsel %vm206, %v203, 0
        %v214 = vsel %vm180, %v205, 0
        %216 = vmatprep.subr.mxu0 0.0
        %217 = vmatpush1.msra.mxu0 0.0
        %218 = vmatprep.subr.mxu0 0.0
        %219 = vmatpush1.msra.mxu0 0.0
        %220 = vmatprep.subr.mxu0 0.0
        %221 = vmatpush1.msra.mxu0 0.0
        %222 = vmatprep.subr.mxu0 0.0
        %223 = vmatpush1.msra.mxu0 0.0
        %224 = vmatprep.subr.mxu0 0.0
        %225 = vmatpush1.msra.mxu0 0.0
        %226 = vmatprep.subr.mxu0 0.0
        %227 = vmatpush1.msra.mxu0 0.0
        %228 = vmatprep.subr.mxu0 0.0
        %229 = vmatpush1.msra.mxu0 0.0
        %230 = vmatprep.subr.mxu0 0.0
        %231 = vmatpush1.msra.mxu0 0.0
        %232 = vmatprep.subr.mxu0 0.0
        %233 = vmatpush1.msra.mxu0 0.0
        %234 = vmatprep.subr.mxu0 0.0
        %235 = vmatpush1.msra.mxu0 0.0
        %236 = vmatprep.subr.mxu0 0.0
        %237 = vmatpush1.msra.mxu0 0.0
        %238 = vmatprep.subr.mxu0 0.0
        %239 = vmatpush1.msra.mxu0 0.0
        %240 = vmatprep.subr.mxu0 0.0
        %241 = vmatpush1.msra.mxu0 0.0
        %242 = vmatprep.subr.mxu0 0.0
        %243 = vmatpush1.msra.mxu0 0.0
        %244 = vmatprep.subr.mxu0 0.0
        %245 = vmatpush1.msra.mxu0 %v214
        %246 = vmatprep.subr.mxu0 0.0
        %247 = vmatpush1.msra.mxu0 %v204
        %248 = vmatprep.subr.mxu0 0.0
        %249 = vmatpush2.msra.mxu0 0.0
        %250 = vmatprep.subr.mxu0 0.0
        %251 = vmatpush2.msra.mxu0 0.0
        %252 = vmatprep.subr.mxu0 0.0
        %253 = vmatpush2.msra.mxu0 0.0
        %254 = vmatprep.subr.mxu0 0.0
        %255 = vmatpush2.msra.mxu0 0.0
        %256 = vmatprep.subr.mxu0 0.0
        %257 = vmatpush2.msra.mxu0 0.0
        %258 = vmatprep.subr.mxu0 0.0
        %259 = vmatpush2.msra.mxu0 0.0
        %260 = vmatprep.subr.mxu0 0.0
        %261 = vmatpush2.msra.mxu0 0.0
        %262 = vmatprep.subr.mxu0 0.0
        %263 = vmatpush2.msra.mxu0 0.0
        %264 = vmatprep.subr.mxu0 0.0
        %265 = vmatpush2.msra.mxu0 0.0
        %266 = vmatprep.subr.mxu0 0.0
        %267 = vmatpush2.msra.mxu0 0.0
        %268 = vmatprep.subr.mxu0 0.0
        %269 = vmatpush2.msra.mxu0 0.0
        %270 = vmatprep.subr.mxu0 0.0
        %271 = vmatpush2.msra.mxu0 0.0
        %272 = vmatprep.subr.mxu0 0.0
        %273 = vmatpush2.msra.mxu0 0.0
        %274 = vmatprep.subr.mxu0 0.0
        %275 = vmatpush2.msra.mxu0 0.0
        %276 = vmatprep.subr.mxu0 0.0
        %277 = vmatpush2.msra.mxu0 0.0
        %278 = vmatprep.subr.mxu0 0.0
        %279 = vmatpush2.msra.mxu0 0.0
        %280 = vmatprep.mubr.f32.mxu0 0.0
        %281 = vmatmul.mubr.f32.gmra.mxu0 %v208
        %v282 = vpop.f32.mrf.mxu0
        %v283 = vadd.f32 0.0, %v282
        %v284 = vpop.f32.mrf.mxu0
        %285 = vmatprep.mubr.f32.mxu0 0.0
        %286 = vmatmul.mubr.f32.gmra.mxu0 %v211
        %v287 = vpop.f32.mrf.mxu0
        %v288 = vadd.f32 0.0, %v287
        %v289 = vpop.f32.mrf.mxu0
        %290 = vdwg.mxu0
        %vm291 = vcmask 64512
        %292 = vst.msk [vmem:[%s162] sm:$0xff] %vm291, %v283
        %293 = vst.msk [vmem:[%s162 + $0x8] sm:$0xff] %vm291, %v288
        %s294 = sand.u32 %s74, 1
        %s295 = scalar_lea.sflag [#allocation4], %s294
        %s296 = sand.u32 %s74, 1
        %s297 = smul.addr %s296, 16
        %s298 = scalar_lea.vmem [#allocation5], %s297
        // Predicated region
        $region33: #{tpu_custom_call.1} parent=27 // pred_check
          %p299 = pneg %p84
        $region34: #{tpu_custom_call.1} parent=27 // pred_check_branch
          %301 = sbr.rel (%p299) target = $region36
        $region35: #{tpu_custom_call.1} parent=27 // pred_region
          %s302 = smul.u32 2, %s19
          %s304 = ssub.s32 256, 256
          %305 = vsyncadd %s295, %s304
          %s306 = smul.addr %s302, 128
          %s307 = scalar_lea.hbm %s2, %s306
          %s308 = sshll.u32 %s298, 4
          %s309 = int_to_ptr.vmem [resolvable:$true] %s308
          %314 = dma.vmem_to_hbm [thread:$0]  %s309, 256, %s307, %s295, 128, 128, 8
        $region36: #{tpu_custom_call.1} parent=27 // pred_fallthru
          _
      $region28: #{tpu_custom_call.1} parent=5 // pred_fallthru
        _
      %p315 = scmp.le.s32.totalorder 2, %s14
      // Predicated region
      $region37: #{tpu_custom_call.1} parent=5 // pred_check
        %p316 = pneg %p315
      $region38: #{tpu_custom_call.1} parent=5 // pred_check_branch
        %318 = sbr.rel (%p316) target = $region40
      $region39: #{tpu_custom_call.1} parent=5 // pred_region
        %s319 = ssub.s32 %s14, 2
        // Predicated region
        $region41: #{tpu_custom_call.1} parent=39 // pred_check
          %p320 = pneg %p90
        $region42: #{tpu_custom_call.1} parent=39 // pred_check_branch
          %322 = sbr.rel (%p320) target = $region44
        $region43: #{tpu_custom_call.1} parent=39 // pred_region
          %s323 = sand.u32 %s75, 1
          %s324 = scalar_lea.sflag [#allocation4], %s323
          %s325 = sand.u32 %s75, 1
          %s326 = smul.addr %s325, 16
          %s327 = scalar_lea.vmem [#allocation5], %s326
          %328 = dma.done %s324, 256
        $region44: #{tpu_custom_call.1} parent=39 // pred_fallthru
          _
      $region40: #{tpu_custom_call.1} parent=5 // pred_fallthru
        _
    $region6: #{tpu_custom_call.1} parent=1 // loop_footer
      %s18 = sadd.s32 1, %s14
    $region7: #{tpu_custom_call.1} parent=1 // loop_footer_branch
      %13 = sbr.rel target = $region3
    $region8: #{tpu_custom_call.1} parent=1 // loop_exit
      _
    %329 = vsyncpa [#allocation3], 1
    %s330 = scalar_lea.sflag [#allocation3], 1
    %331 = vsyncpa %s330, 1
    %332 = vsyncpa [#allocation4], 1
    %s333 = scalar_lea.sflag [#allocation4], 1
    %334 = vsyncpa %s333, 1

</llo_original>
